<compile_context>
chip_gen: v5e
topology: v5e:2x2
jax: 0.10.0
libtpu: 0.0.40
codegen_flags: <defaults>
</compile_context>

<pallas_src>
import functools
from types import SimpleNamespace

import jax
import jax.numpy as jnp
from jax.experimental import pallas as pl
from jax.experimental.pallas import tpu as pltpu


# ---------------------------------------------------------------------------
# Glue: align_corners=True bilinear interpolation matrix (plain JAX, tiny).
# ---------------------------------------------------------------------------
def _bilinear_matrix(out_size: int, in_size: int) -> jnp.ndarray:
    if in_size == 1:
        return jnp.ones((out_size, 1), jnp.float32)
    src = jnp.arange(out_size, dtype=jnp.float32) * (in_size - 1) / (out_size - 1)
    i0 = jnp.clip(jnp.floor(src).astype(jnp.int32), 0, in_size - 1)
    i1 = jnp.clip(i0 + 1, 0, in_size - 1)
    w1 = src - i0.astype(jnp.float32)
    w0 = 1.0 - w1
    rows = jnp.arange(out_size)
    m = jnp.zeros((out_size, in_size), jnp.float32)
    m = m.at[rows, i0].add(w0)
    m = m.at[rows, i1].add(w1)
    return m


def _pick_tile_h(hout: int, target: int = 256) -> int:
    """Largest H-tile <= target that divides Hout and satisfies sublane (8) tiling."""
    if hout <= target:
        return hout
    for t in range(min(target, hout), 7, -1):
        if hout % t == 0 and t % 8 == 0:
            return t
    return hout


def _cost_estimate(B, Hin, Win, Hout, Wout, fuse_method):
    mm_flops = 2 * B * (Hout * Hin * Win + Hout * Win * Wout)
    ew_flops = 12 * B * Hout * Wout
    trans_per_px = {"entropy": 9, "sum": 7, "coff": 5}.get(fuse_method, 0)
    trans = trans_per_px * B * Hout * Wout
    bytes_in = (4 * B * Hin * Win + 4 * B * 2 * Hout * Wout
                + 2 * (Hout * Hin + Win * Wout))
    if fuse_method in ("union", "xor"):
        bytes_out = B * Hout * Wout + 4 * B * Hout * Wout
    else:
        bytes_out = 4 * B * 2 * Hout * Wout + 4 * B * Hout * Wout
    return pl.CostEstimate(flops=mm_flops + ew_flops,
                           transcendentals=trans,
                           bytes_accessed=bytes_in + bytes_out)


# ---------------------------------------------------------------------------
# In-kernel building blocks.
# ---------------------------------------------------------------------------
def _upsample_tile(wh_ref, x_ref, wwt_ref):
    """Bilinear upsample of one H-tile: (tile_h,Hin)@(Hin,Win)@(Win,Wout)."""
    x = x_ref[0, 0, :, :].astype(jnp.bfloat16)                          # (Hin, Win)
    tmp = jnp.dot(wh_ref[...], x, preferred_element_type=jnp.float32)   # (tile_h, Win)
    up = jnp.dot(tmp.astype(jnp.bfloat16), wwt_ref[...],
                 preferred_element_type=jnp.float32)                    # (tile_h, Wout)
    return up


def _softmax2(m0, m1):
    mx = jnp.maximum(m0, m1)
    e0 = jnp.exp(m0 - mx)
    e1 = jnp.exp(m1 - mx)
    inv = 1.0 / (e0 + e1)
    return e0 * inv, e1 * inv


def _coff(alpha, up, m0, m1):
    s = jax.nn.sigmoid(up)
    p0, p1 = _softmax2(m0, m1)
    return (alpha * (1.0 - s) + (1.0 - alpha) * p0,
            alpha * s + (1.0 - alpha) * p1)


def _entropy(up, m0, m1):
    eps = 1e-10
    s = jax.nn.sigmoid(up)
    sam0, sam1 = 1.0 - s, s
    p0, p1 = _softmax2(m0, m1)
    ent_sam = -(sam1 * jnp.log(sam1 + eps) + sam0 * jnp.log(sam0 + eps))
    ent_model = -(p1 * jnp.log(p1 + eps) + p0 * jnp.log(p0 + eps))
    inv_total = 1.0 / (ent_sam + ent_model)
    w_sam = ent_sam * inv_total
    w_model = ent_model * inv_total
    # Matches PyTorch reference exactly: weight_model multiplies SAM probs,
    # weight_sam multiplies model probs (cross-applied, as written upstream).
    return (w_model * sam0 + w_sam * p0,
            w_model * sam1 + w_sam * p1)


def _sum(up, m0, m1):
    s = jax.nn.sigmoid(up)
    p0, p1 = _softmax2(m0, m1)
    return _softmax2(p0 + (1.0 - s), p1 + s)


# ---------------------------------------------------------------------------
# Fused kernels: upsample (+binarize) + fusion in one pass.
# ---------------------------------------------------------------------------
def _fused_float_kernel(fuse_fn, wh_ref, x_ref, wwt_ref, model_ref,
                        pred_ref, low_ref):
    up = _upsample_tile(wh_ref, x_ref, wwt_ref)
    low_ref[0, 0, :, :] = up                                  # returned low_masks
    m0 = model_ref[0, 0, :, :].astype(jnp.float32)
    m1 = model_ref[0, 1, :, :].astype(jnp.float32)
    o0, o1 = fuse_fn(up, m0, m1)
    pred_ref[0, 0, :, :] = o0
    pred_ref[0, 1, :, :] = o1


def _fused_binary_kernel(is_xor, wh_ref, x_ref, wwt_ref, model_ref,
                         pred_ref, low_ref):
    up = _upsample_tile(wh_ref, x_ref, wwt_ref)
    low_ref[0, 0, :, :] = up
    # binary_mask = (low_masks > 0) — thresholded POST-interpolation, as in
    # forward_mask_decoder.  argmax over 2 channels with tie -> channel 0.
    b = up > 0.0
    am = model_ref[0, 1, :, :] > model_ref[0, 0, :, :]
    r = (b ^ am) if is_xor else (b | am)
    pred_ref[0, :, :] = r.astype(jnp.int8)


# ---------------------------------------------------------------------------
# Wrapper: single pallas_call doing decode post-proc + fuse.
# ---------------------------------------------------------------------------
def sam_fuse(low_res_masks, prediction, ori_size, fuse_method,
             alpha=0.5, tile_h_target=256):
    B, C, Hin, Win = low_res_masks.shape
    if C != 1:
        raise ValueError("SAM mask decoder output expected single-channel "
                         "(multimask_output=False)")
    Hout, Wout = ori_size
    if prediction.shape != (B, 2, Hout, Wout):
        raise ValueError(f"prediction shape {prediction.shape} != {(B, 2, Hout, Wout)}")

    tile_h = _pick_tile_h(Hout, tile_h_target)
    n_h = Hout // tile_h

    # bf16 interpolation matrices (2-tap bilinear weights are exact enough).
    wh = _bilinear_matrix(Hout, Hin).astype(jnp.bfloat16)        # (Hout, Hin)
    wwt = _bilinear_matrix(Wout, Win).T.astype(jnp.bfloat16)     # (Win, Wout)

    in_specs = [
        pl.BlockSpec((tile_h, Hin), lambda b, h: (h, 0)),
        pl.BlockSpec((1, 1, Hin, Win), lambda b, h: (b, 0, 0, 0)),
        pl.BlockSpec((Win, Wout), lambda b, h: (0, 0)),
        pl.BlockSpec((1, 2, tile_h, Wout), lambda b, h: (b, 0, h, 0)),
    ]
    low_spec = pl.BlockSpec((1, 1, tile_h, Wout), lambda b, h: (b, 0, h, 0))
    low_struct = jax.ShapeDtypeStruct((B, 1, Hout, Wout), jnp.float32)
    cp = pltpu.CompilerParams(dimension_semantics=("parallel", "parallel"))
    ce = _cost_estimate(B, Hin, Win, Hout, Wout, fuse_method)

    if fuse_method in ("entropy", "sum", "coff"):
        if fuse_method == "coff":
            fuse_fn = functools.partial(_coff, float(alpha))
        elif fuse_method == "entropy":
            fuse_fn = _entropy
        else:
            fuse_fn = _sum
        kernel = functools.partial(_fused_float_kernel, fuse_fn)
        pred_struct = jax.ShapeDtypeStruct((B, 2, Hout, Wout), jnp.float32)
        pred_spec = pl.BlockSpec((1, 2, tile_h, Wout), lambda b, h: (b, 0, h, 0))
        pred, low_masks = pl.pallas_call(
            kernel,
            out_shape=(pred_struct, low_struct),
            grid=(B, n_h),
            in_specs=in_specs,
            out_specs=(pred_spec, low_spec),
            compiler_params=cp,
            cost_estimate=ce,
        )(wh, low_res_masks, wwt, prediction)
        return pred, low_masks

    if fuse_method in ("union", "xor"):
        kernel = functools.partial(_fused_binary_kernel, fuse_method == "xor")
        pred_struct = jax.ShapeDtypeStruct((B, Hout, Wout), jnp.int8)
        pred_spec = pl.BlockSpec((1, tile_h, Wout), lambda b, h: (b, h, 0))
        pred_i8, low_masks = pl.pallas_call(
            kernel,
            out_shape=(pred_struct, low_struct),
            grid=(B, n_h),
            in_specs=in_specs,
            out_specs=(pred_spec, low_spec),
            compiler_params=cp,
            cost_estimate=ce,
        )(wh, low_res_masks, wwt, prediction)
        # torch.logical_or / logical_xor return bool; cast the 1-byte/pixel
        # mask outside (cheap relative to the f32 planes already written).
        return pred_i8.astype(jnp.bool_), low_masks

    raise ValueError(f"unknown fuse_method {fuse_method}")


# ---------------------------------------------------------------------------
# Module wrapper (mirrors SAM_pred.forward's tail: decode post-proc + fuse).
# ---------------------------------------------------------------------------
class SAMPred:
    def __init__(self, args):
        self.args = args

    def forward(self, low_res_masks, prediction, ori_size):
        # TODO(synk): image-encoder / prompt-encoder / mask-decoder /
        # point_mask_slic stages require the pretrained SAM checkpoint and
        # scipy host ops; `low_res_masks` stands in for the decoder output.
        pred, low_masks = sam_fuse(low_res_masks, prediction, ori_size,
                                   self.args.fuse_method,
                                   alpha=getattr(self.args, "alpha", 0.5))
        return pred, low_masks


if __name__ == "__main__":
    key = jax.random.PRNGKey(0)
    k1, k2 = jax.random.split(key)

    B, Hlr, Wlr = 2, 8, 8          # low-res decoder output (stand-in)
    H, W = 16, 16                  # ori_size / prediction spatial size
    low_res_masks = jax.random.normal(k1, (B, 1, Hlr, Wlr), jnp.float32)
    prediction = jax.random.normal(k2, (B, 2, H, W), jnp.float32)

    for method in ("entropy", "sum", "coff", "union", "xor"):
        args = SimpleNamespace(fuse_method=method, alpha=0.6,
                               point=4, positive_point=4, negative_point=4)
        model = SAMPred(args)
        pred, low_masks = model.forward(low_res_masks, prediction, (H, W))
        jax.block_until_ready(pred)
        jax.block_until_ready(low_masks)

    print("KERNEL_OK")
</pallas_src>

<mosaic_0001>
module attributes {stable_mosaic.version = 11 : i64} {
  func.func @_fused_float_kernel(%arg0: i32, %arg1: i32, %arg2: memref<16x8xbf16, #tpu.memory_space<vmem>>, %arg3: memref<1x1x8x8xf32, #tpu.memory_space<vmem>>, %arg4: memref<8x16xbf16, #tpu.memory_space<vmem>>, %arg5: memref<1x2x16x16xf32, #tpu.memory_space<vmem>>, %arg6: memref<1x2x16x16xf32, #tpu.memory_space<vmem>>, %arg7: memref<1x1x16x16xf32, #tpu.memory_space<vmem>>) attributes {dimension_semantics = [#tpu.dimension_semantics<parallel>, #tpu.dimension_semantics<parallel>], iteration_bounds = array<i64: 2, 1>, scalar_prefetch = 0 : i64, scratch_operands = 0 : i64, tpu.core_type = #tpu.core_type<tc>, window_params = [{transform_indices = @transform_0, window_bounds = array<i64: 16, 8>}, {transform_indices = @transform_1, window_bounds = array<i64: 1, 1, 8, 8>}, {pipeline_mode = #tpu.pipeline_mode<synchronous>, transform_indices = @transform_2, window_bounds = array<i64: 8, 16>}, {transform_indices = @transform_3, window_bounds = array<i64: 1, 2, 16, 16>}, {transform_indices = @transform_4, window_bounds = array<i64: 1, 2, 16, 16>}, {transform_indices = @transform_5, window_bounds = array<i64: 1, 1, 16, 16>}]} {
    %c0 = arith.constant 0 : index
    %c0_0 = arith.constant 0 : index
    %c0_1 = arith.constant 0 : index
    %c0_2 = arith.constant 0 : index
    %0 = vector.load %arg3[%c0, %c0_0, %c0_1, %c0_2] : memref<1x1x8x8xf32, #tpu.memory_space<vmem>>, vector<1x1x8x8xf32>
    %1 = vector.shape_cast %0 : vector<1x1x8x8xf32> to vector<8x8xf32>
    %2 = arith.truncf %1 : vector<8x8xf32> to vector<8x8xbf16>
    %c0_3 = arith.constant 0 : index
    %c0_4 = arith.constant 0 : index
    %3 = vector.load %arg2[%c0_3, %c0_4] : memref<16x8xbf16, #tpu.memory_space<vmem>>, vector<16x8xbf16>
    %cst = arith.constant dense<0.000000e+00> : vector<16x8xf32>
    %4 = tpu.matmul %3, %2, %cst {dimension_numbers = #tpu.dot_dimension_numbers<[1], [0], [0], [1], [0, 0, 1, 1], [], []>} : vector<16x8xbf16>, vector<8x8xbf16>, vector<16x8xf32> -> vector<16x8xf32>
    %5 = arith.truncf %4 : vector<16x8xf32> to vector<16x8xbf16>
    %c0_5 = arith.constant 0 : index
    %c0_6 = arith.constant 0 : index
    %6 = vector.load %arg4[%c0_5, %c0_6] : memref<8x16xbf16, #tpu.memory_space<vmem>>, vector<8x16xbf16>
    %cst_7 = arith.constant dense<0.000000e+00> : vector<16x16xf32>
    %7 = tpu.matmul %5, %6, %cst_7 {dimension_numbers = #tpu.dot_dimension_numbers<[1], [0], [0], [1], [0, 0, 1, 1], [], []>} : vector<16x8xbf16>, vector<8x16xbf16>, vector<16x16xf32> -> vector<16x16xf32>
    %c0_8 = arith.constant 0 : index
    %c0_9 = arith.constant 0 : index
    %c0_10 = arith.constant 0 : index
    %c0_11 = arith.constant 0 : index
    %8 = vector.load %arg7[%c0_8, %c0_9, %c0_10, %c0_11] : memref<1x1x16x16xf32, #tpu.memory_space<vmem>>, vector<1x1x16x16xf32>
    %9 = vector.shape_cast %8 : vector<1x1x16x16xf32> to vector<16x16xf32>
    %10 = vector.shape_cast %7 : vector<16x16xf32> to vector<1x1x16x16xf32>
    tpu.vector_store %arg7[%c0_8, %c0_9, %c0_10, %c0_11], %10 {strides = array<i32>} : memref<1x1x16x16xf32, #tpu.memory_space<vmem>>, vector<1x1x16x16xf32>,
    %c0_12 = arith.constant 0 : index
    %c0_13 = arith.constant 0 : index
    %c0_14 = arith.constant 0 : index
    %c0_15 = arith.constant 0 : index
    %11 = vector.load %arg5[%c0_12, %c0_13, %c0_14, %c0_15] : memref<1x2x16x16xf32, #tpu.memory_space<vmem>>, vector<1x1x16x16xf32>
    %12 = vector.shape_cast %11 : vector<1x1x16x16xf32> to vector<16x16xf32>
    %c0_16 = arith.constant 0 : index
    %c1 = arith.constant 1 : index
    %c0_17 = arith.constant 0 : index
    %c0_18 = arith.constant 0 : index
    %13 = vector.load %arg5[%c0_16, %c1, %c0_17, %c0_18] : memref<1x2x16x16xf32, #tpu.memory_space<vmem>>, vector<1x1x16x16xf32>
    %14 = vector.shape_cast %13 : vector<1x1x16x16xf32> to vector<16x16xf32>
    %15 = arith.negf %7 : vector<16x16xf32>
    %16 = math.exp %15 : vector<16x16xf32>
    %cst_19 = arith.constant 1.000000e+00 : f32
    %17 = vector.broadcast %cst_19 : f32 to vector<16x16xf32>
    %18 = arith.addf %17, %16 : vector<16x16xf32>
    %19 = arith.divf %17, %18 : vector<16x16xf32>
    %cst_20 = arith.constant 1.000000e+00 : f32
    %20 = vector.broadcast %cst_20 : f32 to vector<16x16xf32>
    %21 = arith.subf %20, %19 : vector<16x16xf32>
    %22 = arith.maximumf %12, %14 : vector<16x16xf32>
    %23 = arith.subf %12, %22 : vector<16x16xf32>
    %24 = math.exp %23 : vector<16x16xf32>
    %25 = arith.subf %14, %22 : vector<16x16xf32>
    %26 = math.exp %25 : vector<16x16xf32>
    %27 = arith.addf %24, %26 : vector<16x16xf32>
    %cst_21 = arith.constant 1.000000e+00 : f32
    %28 = vector.broadcast %cst_21 : f32 to vector<16x16xf32>
    %29 = arith.divf %28, %27 : vector<16x16xf32>
    %30 = arith.mulf %24, %29 : vector<16x16xf32>
    %31 = arith.mulf %26, %29 : vector<16x16xf32>
    %cst_22 = arith.constant 1.000000e-10 : f32
    %32 = vector.broadcast %cst_22 : f32 to vector<16x16xf32>
    %33 = arith.addf %19, %32 : vector<16x16xf32>
    %34 = math.log %33 : vector<16x16xf32>
    %35 = arith.mulf %19, %34 : vector<16x16xf32>
    %cst_23 = arith.constant 1.000000e-10 : f32
    %36 = vector.broadcast %cst_23 : f32 to vector<16x16xf32>
    %37 = arith.addf %21, %36 : vector<16x16xf32>
    %38 = math.log %37 : vector<16x16xf32>
    %39 = arith.mulf %21, %38 : vector<16x16xf32>
    %40 = arith.addf %35, %39 : vector<16x16xf32>
    %cst_24 = arith.constant 0.000000e+00 : f32
    %41 = vector.broadcast %cst_24 : f32 to vector<16x16xf32>
    %42 = arith.subf %41, %40 : vector<16x16xf32>
    %cst_25 = arith.constant 1.000000e-10 : f32
    %43 = vector.broadcast %cst_25 : f32 to vector<16x16xf32>
    %44 = arith.addf %31, %43 : vector<16x16xf32>
    %45 = math.log %44 : vector<16x16xf32>
    %46 = arith.mulf %31, %45 : vector<16x16xf32>
    %cst_26 = arith.constant 1.000000e-10 : f32
    %47 = vector.broadcast %cst_26 : f32 to vector<16x16xf32>
    %48 = arith.addf %30, %47 : vector<16x16xf32>
    %49 = math.log %48 : vector<16x16xf32>
    %50 = arith.mulf %30, %49 : vector<16x16xf32>
    %51 = arith.addf %46, %50 : vector<16x16xf32>
    %cst_27 = arith.constant 0.000000e+00 : f32
    %52 = vector.broadcast %cst_27 : f32 to vector<16x16xf32>
    %53 = arith.subf %52, %51 : vector<16x16xf32>
    %54 = arith.addf %42, %53 : vector<16x16xf32>
    %cst_28 = arith.constant 1.000000e+00 : f32
    %55 = vector.broadcast %cst_28 : f32 to vector<16x16xf32>
    %56 = arith.divf %55, %54 : vector<16x16xf32>
    %57 = arith.mulf %42, %56 : vector<16x16xf32>
    %58 = arith.mulf %53, %56 : vector<16x16xf32>
    %59 = arith.mulf %58, %21 : vector<16x16xf32>
    %60 = arith.mulf %57, %30 : vector<16x16xf32>
    %61 = arith.addf %59, %60 : vector<16x16xf32>
    %62 = arith.mulf %58, %19 : vector<16x16xf32>
    %63 = arith.mulf %57, %31 : vector<16x16xf32>
    %64 = arith.addf %62, %63 : vector<16x16xf32>
    %c0_29 = arith.constant 0 : index
    %c0_30 = arith.constant 0 : index
    %c0_31 = arith.constant 0 : index
    %c0_32 = arith.constant 0 : index
    %65 = vector.load %arg6[%c0_29, %c0_30, %c0_31, %c0_32] : memref<1x2x16x16xf32, #tpu.memory_space<vmem>>, vector<1x1x16x16xf32>
    %66 = vector.shape_cast %65 : vector<1x1x16x16xf32> to vector<16x16xf32>
    %67 = vector.shape_cast %61 : vector<16x16xf32> to vector<1x1x16x16xf32>
    tpu.vector_store %arg6[%c0_29, %c0_30, %c0_31, %c0_32], %67 {strides = array<i32>} : memref<1x2x16x16xf32, #tpu.memory_space<vmem>>, vector<1x1x16x16xf32>,
    %c0_33 = arith.constant 0 : index
    %c1_34 = arith.constant 1 : index
    %c0_35 = arith.constant 0 : index
    %c0_36 = arith.constant 0 : index
    %68 = vector.load %arg6[%c0_33, %c1_34, %c0_35, %c0_36] : memref<1x2x16x16xf32, #tpu.memory_space<vmem>>, vector<1x1x16x16xf32>
    %69 = vector.shape_cast %68 : vector<1x1x16x16xf32> to vector<16x16xf32>
    %70 = vector.shape_cast %64 : vector<16x16xf32> to vector<1x1x16x16xf32>
    tpu.vector_store %arg6[%c0_33, %c1_34, %c0_35, %c0_36], %70 {strides = array<i32>} : memref<1x2x16x16xf32, #tpu.memory_space<vmem>>, vector<1x1x16x16xf32>,
    return
  }
  func.func @transform_0(%arg0: i32, %arg1: i32) -> (i32, i32) {
    %c0_i32 = arith.constant 0 : i32
    %c0_i32_0 = arith.constant 0 : i32
    return %arg1, %c0_i32 : i32, i32
  }
  func.func @transform_1(%arg0: i32, %arg1: i32) -> (i32, i32, i32, i32) {
    %c0_i32 = arith.constant 0 : i32
    %c0_i32_0 = arith.constant 0 : i32
    %c0_i32_1 = arith.constant 0 : i32
    %c0_i32_2 = arith.constant 0 : i32
    return %arg0, %c0_i32, %c0_i32_0, %c0_i32_1 : i32, i32, i32, i32
  }
  func.func @transform_2(%arg0: i32, %arg1: i32) -> (i32, i32) {
    %c0_i32 = arith.constant 0 : i32
    %c0_i32_0 = arith.constant 0 : i32
    %c0_i32_1 = arith.constant 0 : i32
    return %c0_i32, %c0_i32_0 : i32, i32
  }
  func.func @transform_3(%arg0: i32, %arg1: i32) -> (i32, i32, i32, i32) {
    %c0_i32 = arith.constant 0 : i32
    %c0_i32_0 = arith.constant 0 : i32
    %c0_i32_1 = arith.constant 0 : i32
    return %arg0, %c0_i32, %arg1, %c0_i32_0 : i32, i32, i32, i32
  }
  func.func @transform_4(%arg0: i32, %arg1: i32) -> (i32, i32, i32, i32) {
    %c0_i32 = arith.constant 0 : i32
    %c0_i32_0 = arith.constant 0 : i32
    %c0_i32_1 = arith.constant 0 : i32
    return %arg0, %c0_i32, %arg1, %c0_i32_0 : i32, i32, i32, i32
  }
  func.func @transform_5(%arg0: i32, %arg1: i32) -> (i32, i32, i32, i32) {
    %c0_i32 = arith.constant 0 : i32
    %c0_i32_0 = arith.constant 0 : i32
    %c0_i32_1 = arith.constant 0 : i32
    return %arg0, %c0_i32, %arg1, %c0_i32_0 : i32, i32, i32, i32
  }
}

</mosaic_0001>

<llo_original>
// kernel: tpu_custom_call.1
$region0: #{tpu_custom_call.1}
  #allocation0 [shape = 'u32[]', space=smem, size = 0x4, offset = 0x4, fixed_abs, tag = 'smem constant byte address 0x4 - core index']
  #allocation1 [shape = 'u32[72,128]{1,0:T(1,128)}', space=vmem, size = 0x9000, scoped, tag = 'internal scratch']
  %s0 = inlined_call_operand.vmem [shape: bf16[16,8], index: 0, kind: input, shape index: {}]
  %s1 = inlined_call_operand.hbm [shape: f32[2,1,8,8], index: 1, kind: input, shape index: {}]
  %s2 = inlined_call_operand.vmem [shape: bf16[8,16], index: 2, kind: input, shape index: {}]
  %s3 = inlined_call_operand.hbm [shape: f32[2,2,16,16], index: 3, kind: input, shape index: {}]
  %s4 = inlined_call_operand.hbm [shape: f32[2,2,16,16], index: 4, kind: output, shape index: {0}]
  %s5 = inlined_call_operand.hbm [shape: f32[2,1,16,16], index: 5, kind: output, shape index: {1}]
  %6 = xla_tuple %s4, %s5
  %s7 = sld [smem:[#allocation0]]
  $region65: #{tpu_custom_call.1} parent=0
    _
  %s9 = ssub.s32 1, %s7
  %s10 = scalar_select 0, %s9, %s7
  $region1: #{tpu_custom_call.1} parent=0
    #allocation2 [shape = 'u8[8192]{0}', space=vmem, size = 0x2000, scoped, tag = 'input window, operand 1']
    #allocation3 [shape = 's32[2]{0}', space=sflag, size = 0x8, scoped, tag = 'scoped memory for tpu_custom_call.1']
    #allocation4 [shape = 's32[2]{0}', space=sflag, size = 0x8, scoped, tag = 'scoped memory for tpu_custom_call.1']
    #allocation5 [shape = 'u8[32768]{0}', space=vmem, size = 0x8000, scoped, tag = 'input window, operand 3']
    #allocation6 [shape = 's32[2]{0}', space=sflag, size = 0x8, scoped, tag = 'scoped memory for tpu_custom_call.1']
    #allocation7 [shape = 'u8[32768]{0}', space=vmem, size = 0x8000, scoped, tag = 'output window, operand 0']
    #allocation8 [shape = 'u8[16384]{0}', space=vmem, size = 0x4000, scoped, tag = 'output window, operand 1']
    #allocation9 [shape = 's32[2]{0}', space=sflag, size = 0x8, scoped, tag = 'scoped memory for tpu_custom_call.1']
    %11 = vsyncpa [#allocation3], 0
    %s12 = scalar_lea.sflag [#allocation3], 1
    %13 = vsyncpa %s12, 0
    %14 = vsyncpa [#allocation6], 0
    %s15 = scalar_lea.sflag [#allocation6], 1
    %16 = vsyncpa %s15, 0
    %17 = vsyncpa [#allocation4], 0
    %s18 = scalar_lea.sflag [#allocation4], 1
    %19 = vsyncpa %s18, 0
    %20 = vsyncpa [#allocation9], 0
    %s21 = scalar_lea.sflag [#allocation9], 1
    %22 = vsyncpa %s21, 0
    loop: start=0, step=1, limit=4
    $region2: #{tpu_custom_call.1} parent=1 // loop_pre_header
      _
    $region3: #{tpu_custom_call.1} parent=1 // loop_header
      %s24 = sphi 0, %s28
      %p25 = scmp.ge.s32.totalorder %s24, 4
      %s31 = sphi 0, %s43
      %s32 = sphi 0, %s39
      %s33 = sphi 0, %s31
      %s34 = sphi 0, %s32
      %s35 = sphi 0, %s33
      %s36 = sphi 0, %s34
      %s46 = sphi 0, %s48
      %s49 = sphi 0, %s46
      %s50 = sphi 0, %s49
      %s66 = sphi 0, %s50
      %s72 = sphi 0, %s74
      %s75 = sphi 0, %s72
      %s76 = sphi 0, %s75
      %s92 = sphi 0, %s76
      %s96 = sphi 0, %s96
      %s98 = sphi 0, %s96
      %s99 = sphi 0, %s98
      %s113 = sphi 0, %s99
      %s121 = sphi 0, %s123
      %s124 = sphi 0, %s121
      %s125 = sphi 0, %s124
      %s141 = sphi 0, %s125
      %s149 = sphi 0, %s151
      %s152 = sphi 0, %s149
      %s153 = sphi 0, %s152
      %s169 = sphi 0, %s153
      %s177 = sphi 0, %s179
      %s180 = sphi 0, %s177
      %s181 = sphi 0, %s180
      %s197 = sphi 0, %s181
    $region4: #{tpu_custom_call.1} parent=1 // loop_header_branch
      %27 = sbr.rel (%p25) target = $region8
    $region5: #{tpu_custom_call.1} parent=1 // loop_body
      %s29 = ssub.s32 %s24, 1
      %s30 = ssub.s32 %s24, 2
      %s37 = sadd.s32 1, %s32
      %p38 = scmp.ge.s32.totalorder %s37, 1
      %s39 = scalar_select %p38, 0, %s37
      %s40 = sadd.s32 1, %s31
      %s41 = scalar_select %p38, %s40, %s31
      %p42 = scmp.ge.s32.totalorder %s41, 2
      %s43 = scalar_select %p42, 0, %s41
      %s44 = ssub.s32 %s32, %s39
      %p45 = scmp.eq.s32.totalorder %s44, 0
      %s47 = sadd.s32 %s46, 1
      %s48 = scalar_select %p45, %s46, %s47
      %p51 = pneg %p45
      %p52 = scmp.eq.s32.totalorder %s24, 1
      %p53 = por %p51, %p52
      %p54 = scmp.ne.s32.totalorder %s46, %s49
      %p55 = scmp.eq.s32.totalorder %s24, 0
      %p56 = por %p54, %p55
      %p57 = scmp.ne.s32.totalorder %s46, %s49
      %p58 = scmp.eq.s32.totalorder %s29, 1
      %p59 = por %p57, %p58
      %p60 = scmp.ne.s32.totalorder %s49, %s50
      %p61 = scmp.eq.s32.totalorder %s29, 0
      %p62 = por %p60, %p61
      %p63 = scmp.ne.s32.totalorder %s49, %s50
      %p64 = scmp.eq.s32.totalorder %s30, 1
      %p65 = por %p63, %p64
      %p67 = scmp.ne.s32.totalorder %s50, %s66
      %p68 = scmp.eq.s32.totalorder %s30, 0
      %p69 = por %p67, %p68
      %s70 = ssub.s32 %s31, %s43
      %p71 = scmp.eq.s32.totalorder %s70, 0
      %s73 = sadd.s32 %s72, 1
      %s74 = scalar_select %p71, %s72, %s73
      %p77 = pneg %p71
      %p78 = scmp.eq.s32.totalorder %s24, 1
      %p79 = por %p77, %p78
      %p80 = scmp.ne.s32.totalorder %s72, %s75
      %p81 = scmp.eq.s32.totalorder %s24, 0
      %p82 = por %p80, %p81
      %p83 = scmp.ne.s32.totalorder %s72, %s75
      %p84 = scmp.eq.s32.totalorder %s29, 1
      %p85 = por %p83, %p84
      %p86 = scmp.ne.s32.totalorder %s75, %s76
      %p87 = scmp.eq.s32.totalorder %s29, 0
      %p88 = por %p86, %p87
      %p89 = scmp.ne.s32.totalorder %s75, %s76
      %p90 = scmp.eq.s32.totalorder %s30, 1
      %p91 = por %p89, %p90
      %p93 = scmp.ne.s32.totalorder %s76, %s92
      %p94 = scmp.eq.s32.totalorder %s30, 0
      %p95 = por %p93, %p94
      %s97 = sadd.s32 %s96, 1
      %p100 = scmp.eq.s32.totalorder %s24, 1
      %p101 = scmp.ne.s32.totalorder %s96, %s98
      %p102 = scmp.eq.s32.totalorder %s24, 0
      %p103 = por %p101, %p102
      %p104 = scmp.ne.s32.totalorder %s96, %s98
      %p105 = scmp.eq.s32.totalorder %s29, 1
      %p106 = por %p104, %p105
      %p107 = scmp.ne.s32.totalorder %s98, %s99
      %p108 = scmp.eq.s32.totalorder %s29, 0
      %p109 = por %p107, %p108
      %p110 = scmp.ne.s32.totalorder %s98, %s99
      %p111 = scmp.eq.s32.totalorder %s30, 1
      %p112 = por %p110, %p111
      %p114 = scmp.ne.s32.totalorder %s99, %s113
      %p115 = scmp.eq.s32.totalorder %s30, 0
      %p116 = por %p114, %p115
      %s117 = ssub.s32 %s31, %s43
      %s118 = ssub.s32 %s32, %s39
      %s119 = sor.u32 %s117, %s118
      %p120 = scmp.eq.s32.totalorder %s119, 0
      %s122 = sadd.s32 %s121, 1
      %s123 = scalar_select %p120, %s121, %s122
      %p126 = pneg %p120
      %p127 = scmp.eq.s32.totalorder %s24, 1
      %p128 = por %p126, %p127
      %p129 = scmp.ne.s32.totalorder %s121, %s124
      %p130 = scmp.eq.s32.totalorder %s24, 0
      %p131 = por %p129, %p130
      %p132 = scmp.ne.s32.totalorder %s121, %s124
      %p133 = scmp.eq.s32.totalorder %s29, 1
      %p134 = por %p132, %p133
      %p135 = scmp.ne.s32.totalorder %s124, %s125
      %p136 = scmp.eq.s32.totalorder %s29, 0
      %p137 = por %p135, %p136
      %p138 = scmp.ne.s32.totalorder %s124, %s125
      %p139 = scmp.eq.s32.totalorder %s30, 1
      %p140 = por %p138, %p139
      %p142 = scmp.ne.s32.totalorder %s125, %s141
      %p143 = scmp.eq.s32.totalorder %s30, 0
      %p144 = por %p142, %p143
      %s145 = ssub.s32 %s31, %s43
      %s146 = ssub.s32 %s32, %s39
      %s147 = sor.u32 %s145, %s146
      %p148 = scmp.eq.s32.totalorder %s147, 0
      %s150 = sadd.s32 %s149, 1
      %s151 = scalar_select %p148, %s149, %s150
      %p154 = pneg %p148
      %p155 = scmp.eq.s32.totalorder %s24, 1
      %p156 = por %p154, %p155
      %p157 = scmp.ne.s32.totalorder %s149, %s152
      %p158 = scmp.eq.s32.totalorder %s24, 0
      %p159 = por %p157, %p158
      %p160 = scmp.ne.s32.totalorder %s149, %s152
      %p161 = scmp.eq.s32.totalorder %s29, 1
      %p162 = por %p160, %p161
      %p163 = scmp.ne.s32.totalorder %s152, %s153
      %p164 = scmp.eq.s32.totalorder %s29, 0
      %p165 = por %p163, %p164
      %p166 = scmp.ne.s32.totalorder %s152, %s153
      %p167 = scmp.eq.s32.totalorder %s30, 1
      %p168 = por %p166, %p167
      %p170 = scmp.ne.s32.totalorder %s153, %s169
      %p171 = scmp.eq.s32.totalorder %s30, 0
      %p172 = por %p170, %p171
      %s173 = ssub.s32 %s31, %s43
      %s174 = ssub.s32 %s32, %s39
      %s175 = sor.u32 %s173, %s174
      %p176 = scmp.eq.s32.totalorder %s175, 0
      %s178 = sadd.s32 %s177, 1
      %s179 = scalar_select %p176, %s177, %s178
      %p182 = pneg %p176
      %p183 = scmp.eq.s32.totalorder %s24, 1
      %p184 = por %p182, %p183
      %p185 = scmp.ne.s32.totalorder %s177, %s180
      %p186 = scmp.eq.s32.totalorder %s24, 0
      %p187 = por %p185, %p186
      %p188 = scmp.ne.s32.totalorder %s177, %s180
      %p189 = scmp.eq.s32.totalorder %s29, 1
      %p190 = por %p188, %p189
      %p191 = scmp.ne.s32.totalorder %s180, %s181
      %p192 = scmp.eq.s32.totalorder %s29, 0
      %p193 = por %p191, %p192
      %p194 = scmp.ne.s32.totalorder %s180, %s181
      %p195 = scmp.eq.s32.totalorder %s30, 1
      %p196 = por %p194, %p195
      %p198 = scmp.ne.s32.totalorder %s181, %s197
      %p199 = scmp.eq.s32.totalorder %s30, 0
      %p200 = por %p198, %p199
      %p201 = scmp.le.s32.totalorder 1, %s24
      %p202 = scmp.lt.s32.totalorder %s24, 3
      %p203 = pnand %p201, %p202
      %p204 = pneg %p203
      // Predicated region
      $region9: #{tpu_custom_call.1} parent=5 // pred_check
        _
      $region10: #{tpu_custom_call.1} parent=5 // pred_check_branch
        %206 = sbr.rel (%p203) target = $region12
      $region11: #{tpu_custom_call.1} parent=5 // pred_region
        %s207 = ssub.s32 %s24, 1
        // Predicated region
        $region13: #{tpu_custom_call.1} parent=11 // pred_check
          %p208 = pneg %p62
        $region14: #{tpu_custom_call.1} parent=11 // pred_check_branch
          %210 = sbr.rel (%p208) target = $region16
        $region15: #{tpu_custom_call.1} parent=11 // pred_region
          %s211 = smul.u32 2, %s34
          %p212 = scmp.lt.s32.totalorder %s211, 1
          %s213 = scalar_select %p212, %s211, 1
          %s214 = smul.addr %s213, 4
          %s215 = scalar_lea.vmem %s0, %s214
          %s216 = smul.u32 2, %s34
        $region16: #{tpu_custom_call.1} parent=11 // pred_fallthru
          _
        // Predicated region
        $region17: #{tpu_custom_call.1} parent=11 // pred_check
          %p217 = pneg %p109
        $region18: #{tpu_custom_call.1} parent=11 // pred_check_branch
          %219 = sbr.rel (%p217) target = $region20
        $region19: #{tpu_custom_call.1} parent=11 // pred_region
          _
        $region20: #{tpu_custom_call.1} parent=11 // pred_fallthru
          _
      $region12: #{tpu_custom_call.1} parent=5 // pred_fallthru
        _
      %p220 = scmp.lt.s32.totalorder %s24, 2
      // Predicated region
      $region21: #{tpu_custom_call.1} parent=5 // pred_check
        %p221 = pneg %p220
      $region22: #{tpu_custom_call.1} parent=5 // pred_check_branch
        %223 = sbr.rel (%p221) target = $region24
      $region23: #{tpu_custom_call.1} parent=5 // pred_region
        // Predicated region
        $region25: #{tpu_custom_call.1} parent=23 // pred_check
          %p224 = pneg %p82
        $region26: #{tpu_custom_call.1} parent=23 // pred_check_branch
          %226 = sbr.rel (%p224) target = $region28
        $region27: #{tpu_custom_call.1} parent=23 // pred_region
          %s227 = sand.u32 %s72, 1
          %s228 = scalar_lea.sflag [#allocation3], %s227
          %s229 = sand.u32 %s72, 1
          %s230 = smul.addr %s229, 8
          %s231 = scalar_lea.vmem [#allocation2], %s230
          %233 = vsyncadd %s228, 0
          %s234 = smul.addr %s31, 8
          %s235 = scalar_lea.hbm %s1, %s234
          %s237 = sshll.u32 %s235, 4
          %s238 = int_to_ptr.hbm [resolvable:$true] %s237
          %s239 = sshll.u32 %s231, 4
          %s240 = int_to_ptr.vmem [resolvable:$true] %s239
          %242 = dma.hbm_to_vmem [thread:$0]  %s238, 128, %s240, %s228
        $region28: #{tpu_custom_call.1} parent=23 // pred_fallthru
          _
        // Predicated region
        $region29: #{tpu_custom_call.1} parent=23 // pred_check
          %p243 = pneg %p131
        $region30: #{tpu_custom_call.1} parent=23 // pred_check_branch
          %245 = sbr.rel (%p243) target = $region32
        $region31: #{tpu_custom_call.1} parent=23 // pred_region
          %s246 = sand.u32 %s121, 1
          %s247 = scalar_lea.sflag [#allocation6], %s246
          %s248 = sand.u32 %s121, 1
          %s249 = smul.addr %s248, 32
          %s250 = scalar_lea.vmem [#allocation5], %s249
          %s251 = smul.u32 2, %s32
          %253 = vsyncadd %s247, 0
          %s254 = smul.addr %s31, 4
          %s255 = sadd.s32 %s251, %s254
          %s256 = smul.addr %s255, 8
          %s257 = scalar_lea.hbm %s3, %s256
          %s258 = sshll.u32 %s257, 4
          %s259 = int_to_ptr.hbm [resolvable:$true] %s258
          %s260 = sshll.u32 %s250, 4
          %s261 = int_to_ptr.vmem [resolvable:$true] %s260
          %266 = dma.hbm_to_vmem [thread:$0]  %s259, 512, %s261, %s247, 128, 128, 8
        $region32: #{tpu_custom_call.1} parent=23 // pred_fallthru
          _
      $region24: #{tpu_custom_call.1} parent=5 // pred_fallthru
        _
      %p267 = scmp.le.s32.totalorder 1, %s24
      %p268 = scmp.lt.s32.totalorder %s24, 3
      %p269 = pnand %p267, %p268
      %p270 = pneg %p269
      // Predicated region
      $region33: #{tpu_custom_call.1} parent=5 // pred_check
        _
      $region34: #{tpu_custom_call.1} parent=5 // pred_check_branch
        %272 = sbr.rel (%p269) target = $region36
      $region35: #{tpu_custom_call.1} parent=5 // pred_region
        %s273 = ssub.s32 %s24, 1
        %s274 = sand.u32 %s75, 1
        %s275 = scalar_lea.sflag [#allocation3], %s274
        %s276 = sand.u32 %s75, 1
        %s277 = smul.addr %s276, 8
        %s278 = scalar_lea.vmem [#allocation2], %s277
        // Predicated region
        $region37: #{tpu_custom_call.1} parent=35 // pred_check
          %p279 = pneg %p88
        $region38: #{tpu_custom_call.1} parent=35 // pred_check_branch
          %281 = sbr.rel (%p279) target = $region40
        $region39: #{tpu_custom_call.1} parent=35 // pred_region
          %283 = dma.done %s275, 128
        $region40: #{tpu_custom_call.1} parent=35 // pred_fallthru
          _
        %s284 = sand.u32 %s124, 1
        %s285 = scalar_lea.sflag [#allocation6], %s284
        %s286 = sand.u32 %s124, 1
        %s287 = smul.addr %s286, 32
        %s288 = scalar_lea.vmem [#allocation5], %s287
        // Predicated region
        $region41: #{tpu_custom_call.1} parent=35 // pred_check
          %p289 = pneg %p137
        $region42: #{tpu_custom_call.1} parent=35 // pred_check_branch
          %291 = sbr.rel (%p289) target = $region44
        $region43: #{tpu_custom_call.1} parent=35 // pred_region
          %293 = dma.done %s285, 512
        $region44: #{tpu_custom_call.1} parent=35 // pred_fallthru
          _
        %s294 = smul.u32 2, %s34
        %p295 = scmp.lt.s32.totalorder %s294, 1
        %s296 = scalar_select %p295, %s294, 1
        %s297 = smul.addr %s296, 4
        %s298 = scalar_lea.vmem %s0, %s297
        %p299 = pneg %p62
        %p300 = pneg %p59
        %s301 = sand.u32 %s75, 1
        %s302 = scalar_lea.sflag [#allocation3], %s301
        %s303 = sand.u32 %s75, 1
        %s304 = smul.addr %s303, 8
        %s305 = scalar_lea.vmem [#allocation2], %s304
        %p306 = pneg %p88
        %p307 = pneg %p85
        %p308 = pneg %p109
        %p309 = pneg %p106
        %s310 = sand.u32 %s124, 1
        %s311 = scalar_lea.sflag [#allocation6], %s310
        %s312 = sand.u32 %s124, 1
        %s313 = smul.addr %s312, 32
        %s314 = scalar_lea.vmem [#allocation5], %s313
        %p315 = pneg %p137
        %p316 = pneg %p134
        %p317 = pneg %p165
        %p318 = pneg %p162
        %s319 = sand.u32 %s152, 1
        %s320 = scalar_lea.sflag [#allocation4], %s319
        %s321 = sand.u32 %s152, 1
        %s322 = smul.addr %s321, 32
        %s323 = scalar_lea.vmem [#allocation7], %s322
        %p324 = pneg %p193
        %p325 = pneg %p190
        %s326 = sand.u32 %s180, 1
        %s327 = scalar_lea.sflag [#allocation9], %s326
        %s328 = sand.u32 %s180, 1
        %s329 = smul.addr %s328, 16
        %s330 = scalar_lea.vmem [#allocation8], %s329
        %s331 = smul.u32 2, %s34
        %p332 = scmp.lt.s32.totalorder %s331, 1
        %s333 = scalar_select %p332, %s331, 1
        %s334 = smul.addr %s333, 4
        %s335 = scalar_lea.vmem %s0, %s334
        %s336 = smul.u32 2, %s34
        %s337 = smul.u32 2, %s34
        %s338 = smul.u32 2, %s34
        %s339 = smul.u32 2, %s34
        %v341 = vld [vmem:[%s278] sm:$0xff]
        %v342 = vpack.c.bf16 %v341, %v341
        %v343 = vld [vmem:[%s335] sm:$0xf]
        %v344 = vld [vmem:[%s335 + $0x4] sm:$0xf]
        %v347 = vunpack.c.l.b16 %v343
        %v348 = vunpack.c.l.b16 %v344
        %v349 = vpack.c.b16 %v348, %v347
        %vm350 = vcmask 64512
        %v352 = vsel %vm350, %v349, 0
        %vm354 = vcmask 1043456
        %v356 = vsel %vm354, %v342, 0
        %358 = vmatpush.bf16.msra.mxu0 0
        %359 = vmatpush.bf16.msra.mxu0 0
        %360 = vmatpush.bf16.msra.mxu0 0
        %361 = vmatpush.bf16.msra.mxu0 0
        %362 = vmatpush.bf16.msra.mxu0 0
        %363 = vmatpush.bf16.msra.mxu0 0
        %364 = vmatpush.bf16.msra.mxu0 0
        %365 = vmatpush.bf16.msra.mxu0 %v356
        %366 = vmatmul.bf16.gmra.mxu0 %v352
        %v367 = vpop.f32.mrf.mxu0
        %v368 = vadd.f32 0.0, %v367
        %v369 = vpop.f32.mrf.mxu0
        %v370 = vadd.f32 0.0, %v369
        %371 = vdwg.mxu0
        %v372 = vpack.c.bf16 %v370, %v368
        %v373 = vld [vmem:[%s2] sm:$0xf]
        %v375 = vsel %vm350, %v372, 0
        %v378 = vsel %vm354, %v373, 0
        %380 = vmatpush.bf16.msra.mxu0 0
        %381 = vmatpush.bf16.msra.mxu0 0
        %382 = vmatpush.bf16.msra.mxu0 0
        %383 = vmatpush.bf16.msra.mxu0 0
        %384 = vmatpush.bf16.msra.mxu0 0
        %385 = vmatpush.bf16.msra.mxu0 0
        %386 = vmatpush.bf16.msra.mxu0 0
        %387 = vmatpush.bf16.msra.mxu0 %v378
        %388 = vmatmul.bf16.gmra.mxu0 %v375
        %v389 = vpop.f32.mrf.mxu0
        %v390 = vadd.f32 0.0, %v389
        %v391 = vpop.f32.mrf.mxu0
        %v392 = vadd.f32 0.0, %v391
        %393 = vdwg.mxu0
        %vm394 = vcmask 130048
        %395 = vst.msk [vmem:[%s330] sm:$0xff] %vm394, %v390
        %396 = vst.msk [vmem:[%s330 + $0x8] sm:$0xff] %vm394, %v392
        %v397 = vld [vmem:[%s288] sm:$0xff]
        %v398 = vld [vmem:[%s288 + $0x8] sm:$0xff]
        %s399 = scalar_lea.vmem %s288, 16 [#allocation5]
        %v400 = vld [vmem:[%s399] sm:$0xff]
        %v401 = vld [vmem:[%s399 + $0x8] sm:$0xff]
        %v402 = vxor.u32 %v390, 2147483648
        %v403 = vxor.u32 %v392, 2147483648
        %v404 = vmul.f32 %v402, 1.442695
        %v405 = vpow.pop %v404
        %v406 = vmul.f32 %v403, 1.442695
        %v407 = vpow.pop %v406
        %v408 = vadd.f32 %v405, 1.0
        %v409 = vadd.f32 %v407, 1.0
        %v410 = vrcp.pop %v408
        %v411 = vmul.f32 %v408, %v410
        %v412 = vsub.f32 1.0, %v411
        %v413 = vmul.f32 %v410, %v412
        %v414 = vadd.f32 %v410, %v413
        %vm415 = vweird.f32 %v408
        %vm416 = vweird.f32 %v410
        %vm417 = vmor %vm415, %vm416
        %v418 = vsel %vm417, %v410, %v414
        %v419 = vand.u32 2147483647, %v408
        %vm420 = vcmp.eq.f32.partialorder %v419, 8.507059e+37
        %v421 = vand.u32 %v408, 2147483648
        %v422 = vor.u32 1.1754944e-38, %v421
        %v423 = vsel %vm420, %v422, %v418
        %v424 = vmul.f32 1.0, %v423
        %v425 = vrcp.pop %v409
        %v426 = vmul.f32 %v409, %v425
        %v427 = vsub.f32 1.0, %v426
        %v428 = vmul.f32 %v425, %v427
        %v429 = vadd.f32 %v425, %v428
        %vm430 = vweird.f32 %v409
        %vm431 = vweird.f32 %v425
        %vm432 = vmor %vm430, %vm431
        %v433 = vsel %vm432, %v425, %v429
        %v434 = vand.u32 2147483647, %v409
        %vm435 = vcmp.eq.f32.partialorder %v434, 8.507059e+37
        %v436 = vand.u32 %v409, 2147483648
        %v437 = vor.u32 1.1754944e-38, %v436
        %v438 = vsel %vm435, %v437, %v433
        %v439 = vmul.f32 1.0, %v438
        %v440 = vsub.f32 1.0, %v424
        %v441 = vsub.f32 1.0, %v439
        %v442 = vmax.f32 %v397, %v400
        %v443 = vmax.f32 %v398, %v401
        %v444 = vsub.f32 %v397, %v442
        %v445 = vsub.f32 %v398, %v443
        %v446 = vmul.f32 %v444, 1.442695
        %v447 = vpow.pop %v446
        %v448 = vmul.f32 %v445, 1.442695
        %v449 = vpow.pop %v448
        %v450 = vsub.f32 %v400, %v442
        %v451 = vsub.f32 %v401, %v443
        %v452 = vmul.f32 %v450, 1.442695
        %v453 = vpow.pop %v452
        %v454 = vmul.f32 %v451, 1.442695
        %v455 = vpow.pop %v454
        %v456 = vadd.f32 %v447, %v453
        %v457 = vadd.f32 %v449, %v455
        %v458 = vrcp.pop %v456
        %v459 = vmul.f32 %v456, %v458
        %v460 = vsub.f32 1.0, %v459
        %v461 = vmul.f32 %v458, %v460
        %v462 = vadd.f32 %v458, %v461
        %vm463 = vweird.f32 %v456
        %vm464 = vweird.f32 %v458
        %vm465 = vmor %vm463, %vm464
        %v466 = vsel %vm465, %v458, %v462
        %v467 = vand.u32 2147483647, %v456
        %vm468 = vcmp.eq.f32.partialorder %v467, 8.507059e+37
        %v469 = vand.u32 %v456, 2147483648
        %v470 = vor.u32 1.1754944e-38, %v469
        %v471 = vsel %vm468, %v470, %v466
        %v472 = vmul.f32 1.0, %v471
        %v473 = vrcp.pop %v457
        %v474 = vmul.f32 %v457, %v473
        %v475 = vsub.f32 1.0, %v474
        %v476 = vmul.f32 %v473, %v475
        %v477 = vadd.f32 %v473, %v476
        %vm478 = vweird.f32 %v457
        %vm479 = vweird.f32 %v473
        %vm480 = vmor %vm478, %vm479
        %v481 = vsel %vm480, %v473, %v477
        %v482 = vand.u32 2147483647, %v457
        %vm483 = vcmp.eq.f32.partialorder %v482, 8.507059e+37
        %v484 = vand.u32 %v457, 2147483648
        %v485 = vor.u32 1.1754944e-38, %v484
        %v486 = vsel %vm483, %v485, %v481
        %v487 = vmul.f32 1.0, %v486
        %v488 = vmul.f32 %v447, %v472
        %v489 = vmul.f32 %v449, %v487
        %v490 = vmul.f32 %v453, %v472
        %v491 = vmul.f32 %v455, %v487
        %v492 = vadd.f32 %v424, 1e-10
        %v493 = vadd.f32 %v439, 1e-10
        %v494 = vlog2.pop %v492
        %v495 = vmul.f32 %v494, 0.6931472
        %v496 = vlog2.pop %v493
        %v497 = vmul.f32 %v496, 0.6931472
        %v498 = vmul.f32 %v424, %v495
        %v499 = vmul.f32 %v439, %v497
        %v500 = vadd.f32 %v440, 1e-10
        %v501 = vadd.f32 %v441, 1e-10
        %v502 = vlog2.pop %v500
        %v503 = vmul.f32 %v502, 0.6931472
        %v504 = vlog2.pop %v501
        %v505 = vmul.f32 %v504, 0.6931472
        %v506 = vmul.f32 %v440, %v503
        %v507 = vmul.f32 %v441, %v505
        %v508 = vadd.f32 %v498, %v506
        %v509 = vadd.f32 %v499, %v507
        %v510 = vsub.f32 0.0, %v508
        %v511 = vsub.f32 0.0, %v509
        %v512 = vadd.f32 %v490, 1e-10
        %v513 = vadd.f32 %v491, 1e-10
        %v514 = vlog2.pop %v512
        %v515 = vmul.f32 %v514, 0.6931472
        %v516 = vlog2.pop %v513
        %v517 = vmul.f32 %v516, 0.6931472
        %v518 = vmul.f32 %v490, %v515
        %v519 = vmul.f32 %v491, %v517
        %v520 = vadd.f32 %v488, 1e-10
        %v521 = vadd.f32 %v489, 1e-10
        %v522 = vlog2.pop %v520
        %v523 = vmul.f32 %v522, 0.6931472
        %v524 = vlog2.pop %v521
        %v525 = vmul.f32 %v524, 0.6931472
        %v526 = vmul.f32 %v488, %v523
        %v527 = vmul.f32 %v489, %v525
        %v528 = vadd.f32 %v518, %v526
        %v529 = vadd.f32 %v519, %v527
        %v530 = vsub.f32 0.0, %v528
        %v531 = vsub.f32 0.0, %v529
        %v532 = vadd.f32 %v510, %v530
        %v533 = vadd.f32 %v511, %v531
        %v534 = vrcp.pop %v532
        %v535 = vmul.f32 %v532, %v534
        %v536 = vsub.f32 1.0, %v535
        %v537 = vmul.f32 %v534, %v536
        %v538 = vadd.f32 %v534, %v537
        %vm539 = vweird.f32 %v532
        %vm540 = vweird.f32 %v534
        %vm541 = vmor %vm539, %vm540
        %v542 = vsel %vm541, %v534, %v538
        %v543 = vand.u32 2147483647, %v532
        %vm544 = vcmp.eq.f32.partialorder %v543, 8.507059e+37
        %v545 = vand.u32 %v532, 2147483648
        %v546 = vor.u32 1.1754944e-38, %v545
        %v547 = vsel %vm544, %v546, %v542
        %v548 = vmul.f32 1.0, %v547
        %v549 = vrcp.pop %v533
        %v550 = vmul.f32 %v533, %v549
        %v551 = vsub.f32 1.0, %v550
        %v552 = vmul.f32 %v549, %v551
        %v553 = vadd.f32 %v549, %v552
        %vm554 = vweird.f32 %v533
        %vm555 = vweird.f32 %v549
        %vm556 = vmor %vm554, %vm555
        %v557 = vsel %vm556, %v549, %v553
        %v558 = vand.u32 2147483647, %v533
        %vm559 = vcmp.eq.f32.partialorder %v558, 8.507059e+37
        %v560 = vand.u32 %v533, 2147483648
        %v561 = vor.u32 1.1754944e-38, %v560
        %v562 = vsel %vm559, %v561, %v557
        %v563 = vmul.f32 1.0, %v562
        %v564 = vmul.f32 %v510, %v548
        %v565 = vmul.f32 %v511, %v563
        %v566 = vmul.f32 %v530, %v548
        %v567 = vmul.f32 %v531, %v563
        %v568 = vmul.f32 %v566, %v440
        %v569 = vmul.f32 %v567, %v441
        %v570 = vmul.f32 %v564, %v488
        %v571 = vmul.f32 %v565, %v489
        %v572 = vadd.f32 %v568, %v570
        %v573 = vadd.f32 %v569, %v571
        %v574 = vmul.f32 %v566, %v424
        %v575 = vmul.f32 %v567, %v439
        %v576 = vmul.f32 %v564, %v490
        %v577 = vmul.f32 %v565, %v491
        %v578 = vadd.f32 %v574, %v576
        %v579 = vadd.f32 %v575, %v577
        %580 = vst.msk [vmem:[%s323] sm:$0xff] %vm394, %v572
        %581 = vst.msk [vmem:[%s323 + $0x8] sm:$0xff] %vm394, %v573
        %s582 = scalar_lea.vmem %s323, 16 [#allocation7]
        %583 = vst.msk [vmem:[%s582] sm:$0xff] %vm394, %v578
        %584 = vst.msk [vmem:[%s582 + $0x8] sm:$0xff] %vm394, %v579
        %s585 = sand.u32 %s152, 1
        %s586 = scalar_lea.sflag [#allocation4], %s585
        %s587 = sand.u32 %s152, 1
        %s588 = smul.addr %s587, 32
        %s589 = scalar_lea.vmem [#allocation7], %s588
        %s590 = sand.u32 %s180, 1
        %s591 = scalar_lea.sflag [#allocation9], %s590
        %s592 = sand.u32 %s180, 1
        %s593 = smul.addr %s592, 16
        %s594 = scalar_lea.vmem [#allocation8], %s593
        // Predicated region
        $region45: #{tpu_custom_call.1} parent=35 // pred_check
          %p595 = pneg %p162
        $region46: #{tpu_custom_call.1} parent=35 // pred_check_branch
          %597 = sbr.rel (%p595) target = $region48
        $region47: #{tpu_custom_call.1} parent=35 // pred_region
          %s598 = smul.u32 2, %s34
          %600 = vsyncadd %s586, 0
          %s601 = smul.addr %s33, 4
          %s602 = sadd.s32 %s598, %s601
          %s603 = smul.addr %s602, 8
          %s604 = scalar_lea.hbm %s4, %s603
          %s605 = sshll.u32 %s589, 4
          %s606 = int_to_ptr.vmem [resolvable:$true] %s605
          %s607 = sshll.u32 %s604, 4
          %s608 = int_to_ptr.hbm [resolvable:$true] %s607
          %613 = dma.vmem_to_hbm [thread:$0]  %s606, 512, %s608, %s586, 128, 128, 8
        $region48: #{tpu_custom_call.1} parent=35 // pred_fallthru
          _
        // Predicated region
        $region49: #{tpu_custom_call.1} parent=35 // pred_check
          %p614 = pneg %p190
        $region50: #{tpu_custom_call.1} parent=35 // pred_check_branch
          %616 = sbr.rel (%p614) target = $region52
        $region51: #{tpu_custom_call.1} parent=35 // pred_region
          %s617 = smul.u32 2, %s34
          %619 = vsyncadd %s591, 0
          %s620 = smul.addr %s33, 2
          %s621 = sadd.s32 %s617, %s620
          %s622 = smul.addr %s621, 8
          %s623 = scalar_lea.hbm %s5, %s622
          %s624 = sshll.u32 %s594, 4
          %s625 = int_to_ptr.vmem [resolvable:$true] %s624
          %s626 = sshll.u32 %s623, 4
          %s627 = int_to_ptr.hbm [resolvable:$true] %s626
          %632 = dma.vmem_to_hbm [thread:$0]  %s625, 256, %s627, %s591, 128, 128, 8
        $region52: #{tpu_custom_call.1} parent=35 // pred_fallthru
          _
      $region36: #{tpu_custom_call.1} parent=5 // pred_fallthru
        _
      %p633 = scmp.le.s32.totalorder 2, %s24
      // Predicated region
      $region53: #{tpu_custom_call.1} parent=5 // pred_check
        %p634 = pneg %p633
      $region54: #{tpu_custom_call.1} parent=5 // pred_check_branch
        %636 = sbr.rel (%p634) target = $region56
      $region55: #{tpu_custom_call.1} parent=5 // pred_region
        %s637 = ssub.s32 %s24, 2
        // Predicated region
        $region57: #{tpu_custom_call.1} parent=55 // pred_check
          %p638 = pneg %p168
        $region58: #{tpu_custom_call.1} parent=55 // pred_check_branch
          %640 = sbr.rel (%p638) target = $region60
        $region59: #{tpu_custom_call.1} parent=55 // pred_region
          %s641 = sand.u32 %s153, 1
          %s642 = scalar_lea.sflag [#allocation4], %s641
          %s643 = sand.u32 %s153, 1
          %s644 = smul.addr %s643, 32
          %s645 = scalar_lea.vmem [#allocation7], %s644
          %647 = dma.done %s642, 512
        $region60: #{tpu_custom_call.1} parent=55 // pred_fallthru
          _
        // Predicated region
        $region61: #{tpu_custom_call.1} parent=55 // pred_check
          %p648 = pneg %p196
        $region62: #{tpu_custom_call.1} parent=55 // pred_check_branch
          %650 = sbr.rel (%p648) target = $region64
        $region63: #{tpu_custom_call.1} parent=55 // pred_region
          %s651 = sand.u32 %s181, 1
          %s652 = scalar_lea.sflag [#allocation9], %s651
          %s653 = sand.u32 %s181, 1
          %s654 = smul.addr %s653, 16
          %s655 = scalar_lea.vmem [#allocation8], %s654
          %657 = dma.done %s652, 256
        $region64: #{tpu_custom_call.1} parent=55 // pred_fallthru
          _
      $region56: #{tpu_custom_call.1} parent=5 // pred_fallthru
        _
    $region6: #{tpu_custom_call.1} parent=1 // loop_footer
      %s28 = sadd.s32 1, %s24
    $region7: #{tpu_custom_call.1} parent=1 // loop_footer_branch
      %23 = sbr.rel target = $region3
    $region8: #{tpu_custom_call.1} parent=1 // loop_exit
      _
    %658 = vsyncpa [#allocation3], 1
    %s659 = scalar_lea.sflag [#allocation3], 1
    %660 = vsyncpa %s659, 1
    %661 = vsyncpa [#allocation6], 1
    %s662 = scalar_lea.sflag [#allocation6], 1
    %663 = vsyncpa %s662, 1
    %664 = vsyncpa [#allocation4], 1
    %s665 = scalar_lea.sflag [#allocation4], 1
    %666 = vsyncpa %s665, 1
    %667 = vsyncpa [#allocation9], 1
    %s668 = scalar_lea.sflag [#allocation9], 1
    %669 = vsyncpa %s668, 1

</llo_original>
